<compile_context>
chip_gen: v7x
topology: tpu7x:2x2x1
jax: 0.10.0
libtpu: 0.0.40
codegen_flags: <defaults>
</compile_context>

<pallas_src>
import functools

import jax
import jax.numpy as jnp
from jax.experimental import pallas as pl
from jax.experimental.pallas import tpu as pltpu

STATE_DIM = 129
ACTION_DIM = 31
HIDDEN = 128
OUT_PAD = 32        # padded output width (full-array last dim => legal BlockSpec)
MAX_TILE_B = 2048   # batch tile cap; double-buffered footprint fits default scoped VMEM
MIN_SPLIT_B = 512   # above this, force >= 2 grid steps (v7x megacore sharding)


def _round_up(n, m):
    return ((n + m - 1) // m) * m


def _cdiv(a, b):
    return -(-a // b)


def qnet_kernel(x_ref, w1_ref, b1_ref, w2_ref, b2_ref, w3_ref, b3_ref, o_ref):
    # One fused batch tile of the MLP: activations never leave vregs/VMEM.
    # x arrives in its stored dtype (f32); bf16 cast happens here, for free under
    # the MXU slack. Accumulation + biases stay f32.
    x = x_ref[...]                                            # (tile_b, 129) f32

    # Layer 1: split K=129 into a 128-wide MXU matmul plus a rank-1 VPU update so
    # the contraction is a single MXU pass on v5e (and no wasted second pass on
    # v6e/v7x either). The rank-1 term rides the otherwise-idle VALU slot.
    x_main = x[:, :HIDDEN].astype(jnp.bfloat16)               # (tile_b, 128)
    x_last = x[:, HIDDEN:STATE_DIM].astype(jnp.float32)       # (tile_b, 1)
    w1_main = w1_ref[:HIDDEN, :]                              # (128, 128) bf16
    w1_last = w1_ref[HIDDEN:STATE_DIM, :].astype(jnp.float32)  # (1, 128) f32

    h1 = jnp.dot(x_main, w1_main, preferred_element_type=jnp.float32)
    h1 = h1 + x_last * w1_last + b1_ref[...]
    h1 = jnp.maximum(h1, 0.0).astype(jnp.bfloat16)

    h2 = jnp.dot(h1, w2_ref[...], preferred_element_type=jnp.float32) + b2_ref[...]
    h2 = jnp.maximum(h2, 0.0).astype(jnp.bfloat16)

    out = jnp.dot(h2, w3_ref[...], preferred_element_type=jnp.float32) + b3_ref[...]
    o_ref[...] = out                                          # (tile_b, 32) f32


@functools.partial(jax.jit, static_argnames=("tile_b",))
def _qnet_padded(x, w1, b1, w2, b2, w3, b3, *, tile_b):
    padded_batch = x.shape[0]
    grid = (padded_batch // tile_b,)

    flops = 2 * padded_batch * (HIDDEN * HIDDEN + HIDDEN * HIDDEN + HIDDEN * OUT_PAD) \
        + 2 * padded_batch * HIDDEN  # rank-1 update
    bytes_accessed = (
        padded_batch * STATE_DIM * 4                       # streamed x (f32)
        + padded_batch * OUT_PAD * 4                       # streamed out (f32, 32-wide)
        + (STATE_DIM * HIDDEN + HIDDEN * HIDDEN + HIDDEN * OUT_PAD) * 2  # bf16 weights
        + (HIDDEN + HIDDEN + OUT_PAD) * 4                  # f32 biases
    )

    return pl.pallas_call(
        qnet_kernel,
        out_shape=jax.ShapeDtypeStruct((padded_batch, OUT_PAD), jnp.float32),
        grid_spec=pltpu.PrefetchScalarGridSpec(
            num_scalar_prefetch=0,
            grid=grid,
            in_specs=[
                # Streamed per grid step:
                pl.BlockSpec((tile_b, STATE_DIM), lambda i: (i, 0)),
                # Resident across the whole grid (constant block index):
                pl.BlockSpec((STATE_DIM, HIDDEN), lambda i: (0, 0)),
                pl.BlockSpec((1, HIDDEN), lambda i: (0, 0)),
                pl.BlockSpec((HIDDEN, HIDDEN), lambda i: (0, 0)),
                pl.BlockSpec((1, HIDDEN), lambda i: (0, 0)),
                pl.BlockSpec((HIDDEN, OUT_PAD), lambda i: (0, 0)),
                pl.BlockSpec((1, OUT_PAD), lambda i: (0, 0)),
            ],
            out_specs=pl.BlockSpec((tile_b, OUT_PAD), lambda i: (i, 0)),
        ),
        compiler_params=pltpu.CompilerParams(
            dimension_semantics=("parallel",),   # independent batch tiles (v7x megacore)
            vmem_limit_bytes=32 * 1024 * 1024,
        ),
        cost_estimate=pl.CostEstimate(
            flops=flops, transcendentals=0, bytes_accessed=bytes_accessed),
    )(x, w1, b1, w2, b2, w3, b3)


def qnetwork_forward(x, params, *, tile_b=None):
    """Forward pass matching the PyTorch QNetwork (relu(fc1) -> relu(fc2) -> fc3)."""
    w1, b1, w2, b2, w3, b3 = params
    batch = x.shape[0]

    if tile_b is None:
        # Balanced tiling: minimal padding waste, >= 2 (even) grid steps for
        # large batches so both v7x TensorCores participate.
        num_tiles = _cdiv(batch, MAX_TILE_B)
        if num_tiles == 1 and batch >= MIN_SPLIT_B:
            num_tiles = 2
        if num_tiles > 1 and num_tiles % 2 == 1:
            num_tiles += 1
        tile_b = _round_up(_cdiv(batch, num_tiles), 8)

    padded_batch = _round_up(batch, tile_b)
    if padded_batch != batch:
        x = jnp.pad(x, ((0, padded_batch - batch), (0, 0)))

    out = _qnet_padded(x, w1, b1, w2, b2, w3, b3, tile_b=tile_b)
    return out[:batch, :ACTION_DIM]


def init_params(key):
    # Deterministic init mimicking PyTorch nn.Linear default:
    # U(-1/sqrt(fan_in), 1/sqrt(fan_in)) for both weight and bias.
    def linear(key, fan_in, fan_out):
        kw, kb = jax.random.split(key)
        bound = 1.0 / jnp.sqrt(jnp.float32(fan_in))
        # Stored as (in, out) so the kernel does x @ W directly.
        w = jax.random.uniform(kw, (fan_in, fan_out), jnp.float32, -bound, bound)
        b = jax.random.uniform(kb, (1, fan_out), jnp.float32, -bound, bound)
        return w, b

    k1, k2, k3 = jax.random.split(key, 3)
    w1, b1 = linear(k1, STATE_DIM, HIDDEN)
    w2, b2 = linear(k2, HIDDEN, HIDDEN)
    w3, b3 = linear(k3, HIDDEN, ACTION_DIM)

    # Zero-pad the output layer to width 32; padding columns must stay exactly
    # zero (wrapper slices them off). Any trained/loaded checkpoint must be
    # re-padded with zeros.
    w3 = jnp.pad(w3, ((0, 0), (0, OUT_PAD - ACTION_DIM)))
    b3 = jnp.pad(b3, ((0, 0), (0, OUT_PAD - ACTION_DIM)))

    # bf16 weights (MXU-native), f32 biases (added to the f32 accumulator).
    return (w1.astype(jnp.bfloat16), b1,
            w2.astype(jnp.bfloat16), b2,
            w3.astype(jnp.bfloat16), b3)


def qnetwork_ref(x, params):
    # Pure-JAX reference mirroring the kernel's numerics (bf16 matmul inputs,
    # f32 accumulation, K=129 split) for a tight parity check.
    w1, b1, w2, b2, w3, b3 = params
    x_main = x[:, :HIDDEN].astype(jnp.bfloat16)
    x_last = x[:, HIDDEN:STATE_DIM].astype(jnp.float32)
    w1_main = w1[:HIDDEN, :]
    w1_last = w1[HIDDEN:STATE_DIM, :].astype(jnp.float32)
    h1 = jnp.dot(x_main, w1_main, preferred_element_type=jnp.float32)
    h1 = jnp.maximum(h1 + x_last * w1_last + b1, 0.0).astype(jnp.bfloat16)
    h2 = jnp.maximum(
        jnp.dot(h1, w2, preferred_element_type=jnp.float32) + b2, 0.0).astype(jnp.bfloat16)
    out = jnp.dot(h2, w3, preferred_element_type=jnp.float32) + b3
    return out[:, :ACTION_DIM]


if __name__ == "__main__":
    key = jax.random.PRNGKey(0)
    k_params, k_x1, k_x2 = jax.random.split(key, 3)
    params = init_params(k_params)

    # Small single-tile batch.
    batch = 8
    x = jax.random.normal(k_x1, (batch, STATE_DIM), jnp.float32)
    out = jax.block_until_ready(qnetwork_forward(x, params))
    ref = qnetwork_ref(x, params)
    assert out.shape == (batch, ACTION_DIM)
    assert jnp.allclose(out, ref, atol=1e-2, rtol=1e-2), \
        float(jnp.max(jnp.abs(out - ref)))

    # Ragged batch exercising the multi-tile (2-step grid) + padding path.
    batch2 = 600
    x2 = jax.random.normal(k_x2, (batch2, STATE_DIM), jnp.float32)
    out2 = jax.block_until_ready(qnetwork_forward(x2, params))
    ref2 = qnetwork_ref(x2, params)
    assert out2.shape == (batch2, ACTION_DIM)
    assert jnp.allclose(out2, ref2, atol=1e-2, rtol=1e-2), \
        float(jnp.max(jnp.abs(out2 - ref2)))

    print("KERNEL_OK")
</pallas_src>

<mosaic_0001>
module attributes {stable_mosaic.version = 11 : i64} {
  func.func @qnet_kernel(%arg0: i32, %arg1: memref<8x129xf32, #tpu.memory_space<vmem>>, %arg2: memref<129x128xbf16, #tpu.memory_space<vmem>>, %arg3: memref<1x128xf32, #tpu.memory_space<vmem>>, %arg4: memref<128x128xbf16, #tpu.memory_space<vmem>>, %arg5: memref<1x128xf32, #tpu.memory_space<vmem>>, %arg6: memref<128x32xbf16, #tpu.memory_space<vmem>>, %arg7: memref<1x32xf32, #tpu.memory_space<vmem>>, %arg8: memref<8x32xf32, #tpu.memory_space<vmem>>) attributes {dimension_semantics = [#tpu.dimension_semantics<parallel>], iteration_bounds = array<i64: 1>, scalar_prefetch = 0 : i64, scratch_operands = 0 : i64, tpu.core_type = #tpu.core_type<tc>, window_params = [{transform_indices = @transform_0, window_bounds = array<i64: 8, 129>}, {pipeline_mode = #tpu.pipeline_mode<synchronous>, transform_indices = @transform_1, window_bounds = array<i64: 129, 128>}, {pipeline_mode = #tpu.pipeline_mode<synchronous>, transform_indices = @transform_2, window_bounds = array<i64: 1, 128>}, {pipeline_mode = #tpu.pipeline_mode<synchronous>, transform_indices = @transform_3, window_bounds = array<i64: 128, 128>}, {pipeline_mode = #tpu.pipeline_mode<synchronous>, transform_indices = @transform_4, window_bounds = array<i64: 1, 128>}, {pipeline_mode = #tpu.pipeline_mode<synchronous>, transform_indices = @transform_5, window_bounds = array<i64: 128, 32>}, {pipeline_mode = #tpu.pipeline_mode<synchronous>, transform_indices = @transform_6, window_bounds = array<i64: 1, 32>}, {transform_indices = @transform_7, window_bounds = array<i64: 8, 32>}]} {
    %c0 = arith.constant 0 : index
    %c0_0 = arith.constant 0 : index
    %0 = vector.load %arg1[%c0, %c0_0] : memref<8x129xf32, #tpu.memory_space<vmem>>, vector<8x129xf32>
    %1 = vector.extract_strided_slice %0 {offsets = [0, 0], sizes = [8, 128], strides = [1, 1]} : vector<8x129xf32> to vector<8x128xf32>
    %2 = arith.truncf %1 : vector<8x128xf32> to vector<8x128xbf16>
    %3 = vector.extract_strided_slice %0 {offsets = [0, 128], sizes = [8, 1], strides = [1, 1]} : vector<8x129xf32> to vector<8x1xf32>
    %c0_1 = arith.constant 0 : index
    %c0_2 = arith.constant 0 : index
    %4 = vector.load %arg2[%c0_1, %c0_2] : memref<129x128xbf16, #tpu.memory_space<vmem>>, vector<128x128xbf16>
    %c128 = arith.constant 128 : index
    %c0_3 = arith.constant 0 : index
    %5 = vector.load %arg2[%c128, %c0_3] : memref<129x128xbf16, #tpu.memory_space<vmem>>, vector<1x128xbf16>
    %6 = arith.extf %5 : vector<1x128xbf16> to vector<1x128xf32>
    %cst = arith.constant dense<0.000000e+00> : vector<8x128xf32>
    %7 = tpu.matmul %2, %4, %cst {dimension_numbers = #tpu.dot_dimension_numbers<[1], [0], [0], [1], [0, 0, 1, 1], [], []>} : vector<8x128xbf16>, vector<128x128xbf16>, vector<8x128xf32> -> vector<8x128xf32>
    %8 = vector.broadcast %3 : vector<8x1xf32> to vector<8x128xf32>
    %9 = vector.broadcast %6 : vector<1x128xf32> to vector<8x128xf32>
    %10 = arith.mulf %8, %9 : vector<8x128xf32>
    %11 = arith.addf %7, %10 : vector<8x128xf32>
    %c0_4 = arith.constant 0 : index
    %c0_5 = arith.constant 0 : index
    %12 = vector.load %arg3[%c0_4, %c0_5] : memref<1x128xf32, #tpu.memory_space<vmem>>, vector<1x128xf32>
    %13 = vector.broadcast %12 : vector<1x128xf32> to vector<8x128xf32>
    %14 = arith.addf %11, %13 : vector<8x128xf32>
    %cst_6 = arith.constant 0.000000e+00 : f32
    %15 = vector.broadcast %cst_6 : f32 to vector<8x128xf32>
    %16 = arith.maximumf %14, %15 : vector<8x128xf32>
    %17 = arith.truncf %16 : vector<8x128xf32> to vector<8x128xbf16>
    %c0_7 = arith.constant 0 : index
    %c0_8 = arith.constant 0 : index
    %18 = vector.load %arg4[%c0_7, %c0_8] : memref<128x128xbf16, #tpu.memory_space<vmem>>, vector<128x128xbf16>
    %cst_9 = arith.constant dense<0.000000e+00> : vector<8x128xf32>
    %19 = tpu.matmul %17, %18, %cst_9 {dimension_numbers = #tpu.dot_dimension_numbers<[1], [0], [0], [1], [0, 0, 1, 1], [], []>} : vector<8x128xbf16>, vector<128x128xbf16>, vector<8x128xf32> -> vector<8x128xf32>
    %c0_10 = arith.constant 0 : index
    %c0_11 = arith.constant 0 : index
    %20 = vector.load %arg5[%c0_10, %c0_11] : memref<1x128xf32, #tpu.memory_space<vmem>>, vector<1x128xf32>
    %21 = vector.broadcast %20 : vector<1x128xf32> to vector<8x128xf32>
    %22 = arith.addf %19, %21 : vector<8x128xf32>
    %cst_12 = arith.constant 0.000000e+00 : f32
    %23 = vector.broadcast %cst_12 : f32 to vector<8x128xf32>
    %24 = arith.maximumf %22, %23 : vector<8x128xf32>
    %25 = arith.truncf %24 : vector<8x128xf32> to vector<8x128xbf16>
    %c0_13 = arith.constant 0 : index
    %c0_14 = arith.constant 0 : index
    %26 = vector.load %arg6[%c0_13, %c0_14] : memref<128x32xbf16, #tpu.memory_space<vmem>>, vector<128x32xbf16>
    %cst_15 = arith.constant dense<0.000000e+00> : vector<8x32xf32>
    %27 = tpu.matmul %25, %26, %cst_15 {dimension_numbers = #tpu.dot_dimension_numbers<[1], [0], [0], [1], [0, 0, 1, 1], [], []>} : vector<8x128xbf16>, vector<128x32xbf16>, vector<8x32xf32> -> vector<8x32xf32>
    %c0_16 = arith.constant 0 : index
    %c0_17 = arith.constant 0 : index
    %28 = vector.load %arg7[%c0_16, %c0_17] : memref<1x32xf32, #tpu.memory_space<vmem>>, vector<1x32xf32>
    %29 = vector.broadcast %28 : vector<1x32xf32> to vector<8x32xf32>
    %30 = arith.addf %27, %29 : vector<8x32xf32>
    %c0_18 = arith.constant 0 : index
    %c0_19 = arith.constant 0 : index
    %31 = vector.load %arg8[%c0_18, %c0_19] : memref<8x32xf32, #tpu.memory_space<vmem>>, vector<8x32xf32>
    tpu.vector_store %arg8[%c0_18, %c0_19], %30 {strides = array<i32>} : memref<8x32xf32, #tpu.memory_space<vmem>>, vector<8x32xf32>,
    return
  }
  func.func @transform_0(%arg0: i32) -> (i32, i32) {
    %c0_i32 = arith.constant 0 : i32
    %c0_i32_0 = arith.constant 0 : i32
    return %arg0, %c0_i32 : i32, i32
  }
  func.func @transform_1(%arg0: i32) -> (i32, i32) {
    %c0_i32 = arith.constant 0 : i32
    %c0_i32_0 = arith.constant 0 : i32
    %c0_i32_1 = arith.constant 0 : i32
    return %c0_i32, %c0_i32_0 : i32, i32
  }
  func.func @transform_2(%arg0: i32) -> (i32, i32) {
    %c0_i32 = arith.constant 0 : i32
    %c0_i32_0 = arith.constant 0 : i32
    %c0_i32_1 = arith.constant 0 : i32
    return %c0_i32, %c0_i32_0 : i32, i32
  }
  func.func @transform_3(%arg0: i32) -> (i32, i32) {
    %c0_i32 = arith.constant 0 : i32
    %c0_i32_0 = arith.constant 0 : i32
    %c0_i32_1 = arith.constant 0 : i32
    return %c0_i32, %c0_i32_0 : i32, i32
  }
  func.func @transform_4(%arg0: i32) -> (i32, i32) {
    %c0_i32 = arith.constant 0 : i32
    %c0_i32_0 = arith.constant 0 : i32
    %c0_i32_1 = arith.constant 0 : i32
    return %c0_i32, %c0_i32_0 : i32, i32
  }
  func.func @transform_5(%arg0: i32) -> (i32, i32) {
    %c0_i32 = arith.constant 0 : i32
    %c0_i32_0 = arith.constant 0 : i32
    %c0_i32_1 = arith.constant 0 : i32
    return %c0_i32, %c0_i32_0 : i32, i32
  }
  func.func @transform_6(%arg0: i32) -> (i32, i32) {
    %c0_i32 = arith.constant 0 : i32
    %c0_i32_0 = arith.constant 0 : i32
    %c0_i32_1 = arith.constant 0 : i32
    return %c0_i32, %c0_i32_0 : i32, i32
  }
  func.func @transform_7(%arg0: i32) -> (i32, i32) {
    %c0_i32 = arith.constant 0 : i32
    %c0_i32_0 = arith.constant 0 : i32
    return %arg0, %c0_i32 : i32, i32
  }
}

</mosaic_0001>

<llo_original>
// kernel: _qnet_padded.1
$region0: #{_qnet_padded.1}
  #allocation0 [shape = 'u32[]', space=smem, size = 0x4, offset = 0x4, fixed_abs, tag = 'smem constant byte address 0x4 - core index']
  #allocation1 [shape = 'u32[144,128]{1,0:T(1,128)}', space=vmem, size = 0x12000, scoped, tag = 'internal scratch']
  %s0 = inlined_call_operand.hbm [shape: f32[8,129], index: 0, kind: input, shape index: {}]
  %s1 = inlined_call_operand.vmem [shape: bf16[129,128], index: 1, kind: input, shape index: {}]
  %s2 = inlined_call_operand.vmem [shape: f32[1,128], index: 2, kind: input, shape index: {}]
  %s3 = inlined_call_operand.hbm [shape: bf16[128,128], index: 3, kind: input, shape index: {}]
  %s4 = inlined_call_operand.vmem [shape: f32[1,128], index: 4, kind: input, shape index: {}]
  %s5 = inlined_call_operand.vmem [shape: bf16[128,32], index: 5, kind: input, shape index: {}]
  %s6 = inlined_call_operand.vmem [shape: f32[1,32], index: 6, kind: input, shape index: {}]
  %s7 = inlined_call_operand.hbm [shape: f32[8,32], index: 7, kind: output, shape index: {}]
  %s8 = sld [smem:[#allocation0]]
  $region46: #{_qnet_padded.1} parent=0
    _
  %s10 = ssub.s32 1, %s8
  %s11 = scalar_select 0, %s10, %s8
  $region1: #{_qnet_padded.1} parent=0
    #allocation2 [shape = 'u8[8192]{0}', space=vmem, size = 0x2000, scoped, tag = 'input window, operand 0, single buffered']
    #allocation3 [shape = 's32[1]{0}', space=sflag, size = 0x4, scoped, tag = 'scoped memory for _qnet_padded.1']
    #allocation4 [shape = 's32[1]{0}', space=sflag, size = 0x4, scoped, tag = 'scoped memory for _qnet_padded.1']
    #allocation5 [shape = 'u8[32768]{0}', space=vmem, size = 0x8000, scoped, tag = 'input window, operand 3, single buffered']
    #allocation6 [shape = 's32[1]{0}', space=sflag, size = 0x4, scoped, tag = 'scoped memory for _qnet_padded.1']
    #allocation7 [shape = 'u8[4096]{0}', space=vmem, size = 0x1000, scoped, tag = 'output window, operand 0, single buffered']
    %12 = vsyncpa [#allocation3], 0
    %13 = vsyncpa [#allocation6], 0
    %14 = vsyncpa [#allocation4], 0
    // Predicated region
    $region2: #{_qnet_padded.1} parent=1 // pred_check
      _
    $region3: #{_qnet_padded.1} parent=1 // pred_check_branch
      %16 = sbr.rel (0) target = $region5
    $region4: #{_qnet_padded.1} parent=1 // pred_region
      %s18 = ssub.s32 256, 256
      %19 = vsyncadd [#allocation3], %s18
      %s21 = sshll.u32 [#allocation2], 4
      %s22 = int_to_ptr.vmem [resolvable:$true] %s21
      %24 = dma.hbm_to_vmem [thread:$0]  %s0, 256, %s22, [#allocation3]
    $region5: #{_qnet_padded.1} parent=1 // pred_fallthru
      _
    // Predicated region
    $region6: #{_qnet_padded.1} parent=1 // pred_check
      _
    $region7: #{_qnet_padded.1} parent=1 // pred_check_branch
      %26 = sbr.rel (0) target = $region9
    $region8: #{_qnet_padded.1} parent=1 // pred_region
      _
    $region9: #{_qnet_padded.1} parent=1 // pred_fallthru
      _
    // Predicated region
    $region10: #{_qnet_padded.1} parent=1 // pred_check
      _
    $region11: #{_qnet_padded.1} parent=1 // pred_check_branch
      %28 = sbr.rel (0) target = $region13
    $region12: #{_qnet_padded.1} parent=1 // pred_region
      _
    $region13: #{_qnet_padded.1} parent=1 // pred_fallthru
      _
    // Predicated region
    $region14: #{_qnet_padded.1} parent=1 // pred_check
      _
    $region15: #{_qnet_padded.1} parent=1 // pred_check_branch
      %30 = sbr.rel (0) target = $region17
    $region16: #{_qnet_padded.1} parent=1 // pred_region
      %s32 = ssub.s32 1024, 1024
      %33 = vsyncadd [#allocation6], %s32
      %s34 = sshll.u32 [#allocation5], 4
      %s35 = int_to_ptr.vmem [resolvable:$true] %s34
      %40 = dma.hbm_to_vmem [thread:$0]  %s3, 1024, %s35, [#allocation6], 64, 64, 4
    $region17: #{_qnet_padded.1} parent=1 // pred_fallthru
      _
    // Predicated region
    $region18: #{_qnet_padded.1} parent=1 // pred_check
      _
    $region19: #{_qnet_padded.1} parent=1 // pred_check_branch
      %42 = sbr.rel (0) target = $region21
    $region20: #{_qnet_padded.1} parent=1 // pred_region
      _
    $region21: #{_qnet_padded.1} parent=1 // pred_fallthru
      _
    // Predicated region
    $region22: #{_qnet_padded.1} parent=1 // pred_check
      _
    $region23: #{_qnet_padded.1} parent=1 // pred_check_branch
      %44 = sbr.rel (0) target = $region25
    $region24: #{_qnet_padded.1} parent=1 // pred_region
      _
    $region25: #{_qnet_padded.1} parent=1 // pred_fallthru
      _
    // Predicated region
    $region26: #{_qnet_padded.1} parent=1 // pred_check
      _
    $region27: #{_qnet_padded.1} parent=1 // pred_check_branch
      %46 = sbr.rel (0) target = $region29
    $region28: #{_qnet_padded.1} parent=1 // pred_region
      _
    $region29: #{_qnet_padded.1} parent=1 // pred_fallthru
      _
    // Predicated region
    $region30: #{_qnet_padded.1} parent=1 // pred_check
      _
    $region31: #{_qnet_padded.1} parent=1 // pred_check_branch
      %48 = sbr.rel (0) target = $region33
    $region32: #{_qnet_padded.1} parent=1 // pred_region
      %49 = dma.done [#allocation3], 256
    $region33: #{_qnet_padded.1} parent=1 // pred_fallthru
      _
    // Predicated region
    $region34: #{_qnet_padded.1} parent=1 // pred_check
      _
    $region35: #{_qnet_padded.1} parent=1 // pred_check_branch
      %51 = sbr.rel (0) target = $region37
    $region36: #{_qnet_padded.1} parent=1 // pred_region
      %52 = dma.done [#allocation6], 1024
    $region37: #{_qnet_padded.1} parent=1 // pred_fallthru
      _
    %v54 = vld [vmem:[#allocation2] sm:$0xff]
    %v55 = vld [vmem:[#allocation2 + $0x8] sm:$0xff]
    %v56 = vpack.c.bf16 %v54, %v54
    %v57 = vld [vmem:[%s1] sm:$0xf]
    %v58 = vld [vmem:[%s1 + $0x4] sm:$0xf]
    %v59 = vld [vmem:[%s1 + $0x8] sm:$0xf]
    %v60 = vld [vmem:[%s1 + $0xc] sm:$0xf]
    %v61 = vld [vmem:[%s1 + $0x10] sm:$0xf]
    %v62 = vld [vmem:[%s1 + $0x14] sm:$0xf]
    %v63 = vld [vmem:[%s1 + $0x18] sm:$0xf]
    %v64 = vld [vmem:[%s1 + $0x1c] sm:$0xf]
    %v65 = vld [vmem:[%s1 + $0x20] sm:$0xf]
    %v66 = vld [vmem:[%s1 + $0x24] sm:$0xf]
    %v67 = vld [vmem:[%s1 + $0x28] sm:$0xf]
    %v68 = vld [vmem:[%s1 + $0x2c] sm:$0xf]
    %v69 = vld [vmem:[%s1 + $0x30] sm:$0xf]
    %v70 = vld [vmem:[%s1 + $0x34] sm:$0xf]
    %v71 = vld [vmem:[%s1 + $0x38] sm:$0xf]
    %v72 = vld [vmem:[%s1 + $0x3c] sm:$0xf]
    %v73 = vld [vmem:[%s1 + $0x40] sm:$0x1]
    %v74 = vunpack.c.l.bf16 %v73
    %76 = vset.pattern.permute.xlu0 0
    %77 = vperm.xlu0 %76, %v55
    %v78 = vpop.permute.xlu0 %77
    %v80 = vlaneseq
    %v81 = vshrl.u32 %v80, 7
    %v82 = vsub.s32 0, %v81
    %v83 = vrot.slane %v74, %v82
    %v84 = vmul.f32 %v78, %v83
    %v101 = vunpack.c.l.b16 %v57
    %v102 = vunpack.c.l.b16 %v58
    %v103 = vunpack.c.l.b16 %v59
    %v104 = vunpack.c.l.b16 %v60
    %v105 = vunpack.c.l.b16 %v61
    %v106 = vunpack.c.l.b16 %v62
    %v107 = vunpack.c.l.b16 %v63
    %v108 = vunpack.c.l.b16 %v64
    %v109 = vunpack.c.l.b16 %v65
    %v110 = vunpack.c.l.b16 %v66
    %v111 = vunpack.c.l.b16 %v67
    %v112 = vunpack.c.l.b16 %v68
    %v113 = vunpack.c.l.b16 %v69
    %v114 = vunpack.c.l.b16 %v70
    %v115 = vunpack.c.l.b16 %v71
    %v116 = vunpack.c.l.b16 %v72
    %v117 = vpack.c.b16 %v102, %v101
    %v118 = vpack.c.b16 %v104, %v103
    %v119 = vpack.c.b16 %v106, %v105
    %v120 = vpack.c.b16 %v108, %v107
    %v121 = vpack.c.b16 %v110, %v109
    %v122 = vpack.c.b16 %v112, %v111
    %v123 = vpack.c.b16 %v114, %v113
    %v124 = vpack.c.b16 %v116, %v115
    %133 = vmatprep.subr.bf16.mxu0 0
    %134 = vmatpush1.bf16.msra.mxu0 %v117
    %135 = vmatprep.subr.bf16.mxu0 0
    %136 = vmatpush1.bf16.msra.mxu0 %v118
    %137 = vmatprep.subr.bf16.mxu0 0
    %138 = vmatpush1.bf16.msra.mxu0 %v119
    %139 = vmatprep.subr.bf16.mxu0 0
    %140 = vmatpush1.bf16.msra.mxu0 %v120
    %141 = vmatprep.subr.bf16.mxu0 0
    %142 = vmatpush1.bf16.msra.mxu0 %v121
    %143 = vmatprep.subr.bf16.mxu0 0
    %144 = vmatpush1.bf16.msra.mxu0 %v122
    %145 = vmatprep.subr.bf16.mxu0 0
    %146 = vmatpush1.bf16.msra.mxu0 %v123
    %147 = vmatprep.subr.bf16.mxu0 0
    %148 = vmatpush1.bf16.msra.mxu0 %v124
    %149 = vmatprep.subr.bf16.mxu0 0
    %150 = vmatpush1.bf16.msra.mxu0 0
    %151 = vmatprep.subr.bf16.mxu0 0
    %152 = vmatpush1.bf16.msra.mxu0 0
    %153 = vmatprep.subr.bf16.mxu0 0
    %154 = vmatpush1.bf16.msra.mxu0 0
    %155 = vmatprep.subr.bf16.mxu0 0
    %156 = vmatpush1.bf16.msra.mxu0 0
    %157 = vmatprep.subr.bf16.mxu0 0
    %158 = vmatpush1.bf16.msra.mxu0 0
    %159 = vmatprep.subr.bf16.mxu0 0
    %160 = vmatpush1.bf16.msra.mxu0 0
    %161 = vmatprep.subr.bf16.mxu0 0
    %162 = vmatpush1.bf16.msra.mxu0 0
    %163 = vmatprep.subr.bf16.mxu0 0
    %164 = vmatpush1.bf16.msra.mxu0 0
    %165 = vmatprep.mubr.bf16.mxu0 0
    %166 = vmatmul.mubr.bf16.gmra.mrb[0].mxu0 %v56
    %v167 = vpop.f32.mrb[0].mxu0
    %v168 = vadd.f32 %v84, %v167
    %v169 = vpop.f32.mrb[0].mxu0
    %v170 = vpop.f32.mrb[0].mxu0
    %v171 = vpop.f32.mrb[0].mxu0
    %172 = vdwg.mxu0
    %v173 = vld [vmem:[%s2] sm:$0x1]
    %v175 = vlaneseq
    %v176 = vshrl.u32 %v175, 7
    %v177 = vsub.s32 0, %v176
    %v178 = vrot.slane %v173, %v177
    %v180 = vadd.f32 %v168, %v178
    %v181 = vmax.f32 %v180, 0.0
    %v182 = vpack.c.bf16 %v181, %v181
    %v183 = vld [vmem:[#allocation5] sm:$0xf]
    %v184 = vld [vmem:[#allocation5 + $0x4] sm:$0xf]
    %v185 = vld [vmem:[#allocation5 + $0x8] sm:$0xf]
    %v186 = vld [vmem:[#allocation5 + $0xc] sm:$0xf]
    %v187 = vld [vmem:[#allocation5 + $0x10] sm:$0xf]
    %v188 = vld [vmem:[#allocation5 + $0x14] sm:$0xf]
    %v189 = vld [vmem:[#allocation5 + $0x18] sm:$0xf]
    %v190 = vld [vmem:[#allocation5 + $0x1c] sm:$0xf]
    %v191 = vld [vmem:[#allocation5 + $0x20] sm:$0xf]
    %v192 = vld [vmem:[#allocation5 + $0x24] sm:$0xf]
    %v193 = vld [vmem:[#allocation5 + $0x28] sm:$0xf]
    %v194 = vld [vmem:[#allocation5 + $0x2c] sm:$0xf]
    %v195 = vld [vmem:[#allocation5 + $0x30] sm:$0xf]
    %v196 = vld [vmem:[#allocation5 + $0x34] sm:$0xf]
    %v197 = vld [vmem:[#allocation5 + $0x38] sm:$0xf]
    %v198 = vld [vmem:[#allocation5 + $0x3c] sm:$0xf]
    %v199 = vld [vmem:[%s4] sm:$0x1]
    %v201 = vlaneseq
    %v202 = vshrl.u32 %v201, 7
    %v203 = vsub.s32 0, %v202
    %v204 = vrot.slane %v199, %v203
    %v222 = vunpack.c.l.b16 %v183
    %v223 = vunpack.c.l.b16 %v184
    %v224 = vunpack.c.l.b16 %v185
    %v225 = vunpack.c.l.b16 %v186
    %v226 = vunpack.c.l.b16 %v187
    %v227 = vunpack.c.l.b16 %v188
    %v228 = vunpack.c.l.b16 %v189
    %v229 = vunpack.c.l.b16 %v190
    %v230 = vunpack.c.l.b16 %v191
    %v231 = vunpack.c.l.b16 %v192
    %v232 = vunpack.c.l.b16 %v193
    %v233 = vunpack.c.l.b16 %v194
    %v234 = vunpack.c.l.b16 %v195
    %v235 = vunpack.c.l.b16 %v196
    %v236 = vunpack.c.l.b16 %v197
    %v237 = vunpack.c.l.b16 %v198
    %v238 = vpack.c.b16 %v223, %v222
    %v239 = vpack.c.b16 %v225, %v224
    %v240 = vpack.c.b16 %v227, %v226
    %v241 = vpack.c.b16 %v229, %v228
    %v242 = vpack.c.b16 %v231, %v230
    %v243 = vpack.c.b16 %v233, %v232
    %v244 = vpack.c.b16 %v235, %v234
    %v245 = vpack.c.b16 %v237, %v236
    %254 = vmatprep.subr.bf16.mxu0 0
    %255 = vmatpush1.bf16.msra.mxu0 %v238
    %256 = vmatprep.subr.bf16.mxu0 0
    %257 = vmatpush1.bf16.msra.mxu0 %v239
    %258 = vmatprep.subr.bf16.mxu0 0
    %259 = vmatpush1.bf16.msra.mxu0 %v240
    %260 = vmatprep.subr.bf16.mxu0 0
    %261 = vmatpush1.bf16.msra.mxu0 %v241
    %262 = vmatprep.subr.bf16.mxu0 0
    %263 = vmatpush1.bf16.msra.mxu0 %v242
    %264 = vmatprep.subr.bf16.mxu0 0
    %265 = vmatpush1.bf16.msra.mxu0 %v243
    %266 = vmatprep.subr.bf16.mxu0 0
    %267 = vmatpush1.bf16.msra.mxu0 %v244
    %268 = vmatprep.subr.bf16.mxu0 0
    %269 = vmatpush1.bf16.msra.mxu0 %v245
    %270 = vmatprep.subr.bf16.mxu0 0
    %271 = vmatpush1.bf16.msra.mxu0 0
    %272 = vmatprep.subr.bf16.mxu0 0
    %273 = vmatpush1.bf16.msra.mxu0 0
    %274 = vmatprep.subr.bf16.mxu0 0
    %275 = vmatpush1.bf16.msra.mxu0 0
    %276 = vmatprep.subr.bf16.mxu0 0
    %277 = vmatpush1.bf16.msra.mxu0 0
    %278 = vmatprep.subr.bf16.mxu0 0
    %279 = vmatpush1.bf16.msra.mxu0 0
    %280 = vmatprep.subr.bf16.mxu0 0
    %281 = vmatpush1.bf16.msra.mxu0 0
    %282 = vmatprep.subr.bf16.mxu0 0
    %283 = vmatpush1.bf16.msra.mxu0 0
    %284 = vmatprep.subr.bf16.mxu0 0
    %285 = vmatpush1.bf16.msra.mxu0 0
    %286 = vmatprep.mubr.bf16.mxu0 0
    %287 = vmatmul.mubr.bf16.gmra.mrb[0].mxu0 %v182
    %v288 = vpop.f32.mrb[0].mxu0
    %v289 = vadd.f32 %v204, %v288
    %v290 = vpop.f32.mrb[0].mxu0
    %v291 = vpop.f32.mrb[0].mxu0
    %v292 = vpop.f32.mrb[0].mxu0
    %293 = vdwg.mxu0
    %v294 = vmax.f32 %v289, 0.0
    %v295 = vpack.c.bf16 %v294, %v294
    %v296 = vld [vmem:[%s5] sm:$0xf]
    %v297 = vld [vmem:[%s5 + $0x4] sm:$0xf]
    %v298 = vld [vmem:[%s5 + $0x8] sm:$0xf]
    %v299 = vld [vmem:[%s5 + $0xc] sm:$0xf]
    %v300 = vld [vmem:[%s5 + $0x10] sm:$0xf]
    %v301 = vld [vmem:[%s5 + $0x14] sm:$0xf]
    %v302 = vld [vmem:[%s5 + $0x18] sm:$0xf]
    %v303 = vld [vmem:[%s5 + $0x1c] sm:$0xf]
    %v304 = vld [vmem:[%s5 + $0x20] sm:$0xf]
    %v305 = vld [vmem:[%s5 + $0x24] sm:$0xf]
    %v306 = vld [vmem:[%s5 + $0x28] sm:$0xf]
    %v307 = vld [vmem:[%s5 + $0x2c] sm:$0xf]
    %v308 = vld [vmem:[%s5 + $0x30] sm:$0xf]
    %v309 = vld [vmem:[%s5 + $0x34] sm:$0xf]
    %v310 = vld [vmem:[%s5 + $0x38] sm:$0xf]
    %v311 = vld [vmem:[%s5 + $0x3c] sm:$0xf]
    %v312 = vld [vmem:[%s6] sm:$0x1]
    %v314 = vlaneseq
    %v315 = vshrl.u32 %v314, 7
    %v316 = vsub.s32 0, %v315
    %v317 = vrot.slane %v312, %v316
    %v335 = vunpack.c.l.b16 %v296
    %v336 = vunpack.c.l.b16 %v297
    %v337 = vunpack.c.l.b16 %v298
    %v338 = vunpack.c.l.b16 %v299
    %v339 = vunpack.c.l.b16 %v300
    %v340 = vunpack.c.l.b16 %v301
    %v341 = vunpack.c.l.b16 %v302
    %v342 = vunpack.c.l.b16 %v303
    %v343 = vunpack.c.l.b16 %v304
    %v344 = vunpack.c.l.b16 %v305
    %v345 = vunpack.c.l.b16 %v306
    %v346 = vunpack.c.l.b16 %v307
    %v347 = vunpack.c.l.b16 %v308
    %v348 = vunpack.c.l.b16 %v309
    %v349 = vunpack.c.l.b16 %v310
    %v350 = vunpack.c.l.b16 %v311
    %v351 = vpack.c.b16 %v336, %v335
    %v352 = vpack.c.b16 %v338, %v337
    %v353 = vpack.c.b16 %v340, %v339
    %v354 = vpack.c.b16 %v342, %v341
    %v355 = vpack.c.b16 %v344, %v343
    %v356 = vpack.c.b16 %v346, %v345
    %v357 = vpack.c.b16 %v348, %v347
    %v358 = vpack.c.b16 %v350, %v349
    %367 = vmatprep.subr.bf16.mxu0 0
    %368 = vmatpush1.bf16.msra.mxu0 %v351
    %369 = vmatprep.subr.bf16.mxu0 0
    %370 = vmatpush1.bf16.msra.mxu0 %v352
    %371 = vmatprep.subr.bf16.mxu0 0
    %372 = vmatpush1.bf16.msra.mxu0 %v353
    %373 = vmatprep.subr.bf16.mxu0 0
    %374 = vmatpush1.bf16.msra.mxu0 %v354
    %375 = vmatprep.subr.bf16.mxu0 0
    %376 = vmatpush1.bf16.msra.mxu0 %v355
    %377 = vmatprep.subr.bf16.mxu0 0
    %378 = vmatpush1.bf16.msra.mxu0 %v356
    %379 = vmatprep.subr.bf16.mxu0 0
    %380 = vmatpush1.bf16.msra.mxu0 %v357
    %381 = vmatprep.subr.bf16.mxu0 0
    %382 = vmatpush1.bf16.msra.mxu0 %v358
    %383 = vmatprep.subr.bf16.mxu0 0
    %384 = vmatpush1.bf16.msra.mxu0 0
    %385 = vmatprep.subr.bf16.mxu0 0
    %386 = vmatpush1.bf16.msra.mxu0 0
    %387 = vmatprep.subr.bf16.mxu0 0
    %388 = vmatpush1.bf16.msra.mxu0 0
    %389 = vmatprep.subr.bf16.mxu0 0
    %390 = vmatpush1.bf16.msra.mxu0 0
    %391 = vmatprep.subr.bf16.mxu0 0
    %392 = vmatpush1.bf16.msra.mxu0 0
    %393 = vmatprep.subr.bf16.mxu0 0
    %394 = vmatpush1.bf16.msra.mxu0 0
    %395 = vmatprep.subr.bf16.mxu0 0
    %396 = vmatpush1.bf16.msra.mxu0 0
    %397 = vmatprep.subr.bf16.mxu0 0
    %398 = vmatpush1.bf16.msra.mxu0 0
    %399 = vmatprep.mubr.bf16.mxu0 0
    %400 = vmatmul.mubr.bf16.gmra.mrb[0].mxu0 %v295
    %v401 = vpop.f32.mrb[0].mxu0
    %v402 = vadd.f32 %v317, %v401
    %v403 = vpop.f32.mrb[0].mxu0
    %v404 = vpop.f32.mrb[0].mxu0
    %v405 = vpop.f32.mrb[0].mxu0
    %406 = vdwg.mxu0
    %vm407 = vcmask 261120
    %408 = vst.msk [vmem:[#allocation7] sm:$0xff] %vm407, %v402
    // Predicated region
    $region38: #{_qnet_padded.1} parent=1 // pred_check
      _
    $region39: #{_qnet_padded.1} parent=1 // pred_check_branch
      %410 = sbr.rel (0) target = $region41
    $region40: #{_qnet_padded.1} parent=1 // pred_region
      %s412 = ssub.s32 128, 128
      %413 = vsyncadd [#allocation4], %s412
      %s415 = sshll.u32 [#allocation7], 4
      %s416 = int_to_ptr.vmem [resolvable:$true] %s415
      %418 = dma.vmem_to_hbm [thread:$0]  %s416, 128, %s7, [#allocation4]
    $region41: #{_qnet_padded.1} parent=1 // pred_fallthru
      _
    // Predicated region
    $region42: #{_qnet_padded.1} parent=1 // pred_check
      _
    $region43: #{_qnet_padded.1} parent=1 // pred_check_branch
      %420 = sbr.rel (0) target = $region45
    $region44: #{_qnet_padded.1} parent=1 // pred_region
      %421 = dma.done [#allocation4], 128
    $region45: #{_qnet_padded.1} parent=1 // pred_fallthru
      _
    %422 = vsyncpa [#allocation3], 1
    %423 = vsyncpa [#allocation6], 1
    %424 = vsyncpa [#allocation4], 1

</llo_original>
